<compile_context>
chip_gen: v5e
topology: v5e:2x2
jax: 0.10.0
libtpu: 0.0.40
codegen_flags: <defaults>
</compile_context>

<pallas_src>
import jax
import jax.numpy as jnp
from jax.experimental import pallas as pl
from jax.experimental.pallas import tpu as pltpu


# ---------------------------------------------------------------------------
# Kernels
# ---------------------------------------------------------------------------

def _cat4_transpose_kernel_folded(x_ref, o_ref):
    """x_ref: (bb, bc, H, W)  ->  o_ref: (bb, 4, bc, W*H)  (lane-dense)."""
    t = jnp.swapaxes(x_ref[...], -1, -2)            # (bb, bc, W, H): XLU transpose
    tf = t.reshape(t.shape[0], t.shape[1], -1)      # (bb, bc, W*H): lane-dense
    # Replicate into the 4 concat slices (static unrolled).  The transpose /
    # relayout is done once per tile; the 4 stores feed one big contiguous
    # output DMA (HBM write is the dominant cost, VMEM stores are cheap).
    for r in range(4):
        o_ref[:, r, :, :] = tf


def _cat4_transpose_kernel(x_ref, o_ref):
    """x_ref: (bb, bc, H, W)  ->  o_ref: (bb, 4, bc, W, H)."""
    t = jnp.swapaxes(x_ref[...], -1, -2)            # (bb, bc, W, H)
    for r in range(4):
        o_ref[:, r, :, :, :] = t


# ---------------------------------------------------------------------------
# Block planning (padded-VMEM accounting)
# ---------------------------------------------------------------------------

def _pad_to(n, m):
    return ((n + m - 1) // m) * m


def _divisors_desc(n):
    return [d for d in range(n, 0, -1) if n % d == 0]


def _sublane(dtype):
    return {4: 8, 2: 16, 1: 32}.get(jnp.dtype(dtype).itemsize, 8)


def _plan_blocks(B, C, H, W, dtype, fold_wh, budget_bytes):
    """Pick (bb, bc) batch/channel block sizes under a padded-VMEM budget."""
    itemsize = jnp.dtype(dtype).itemsize
    sub = _sublane(dtype)

    def in_bytes(bb, bc):        # input tile (bb, bc, H, W), last 2 dims padded
        return bb * bc * _pad_to(H, sub) * _pad_to(W, 128) * itemsize

    def out_bytes(bb, bc):
        if fold_wh:              # output tile (bb, 4, bc, W*H)
            return bb * 4 * _pad_to(bc, sub) * _pad_to(W * H, 128) * itemsize
        return bb * 4 * bc * _pad_to(W, sub) * _pad_to(H, 128) * itemsize

    def live_bytes(bb, bc):      # double-buffered input + output
        return 2 * (in_bytes(bb, bc) + out_bytes(bb, bc))

    if fold_wh:
        # Folded output block has bc as its second-to-last dim -> it must be a
        # full extent or a multiple of the sublane granularity.
        bc_cands = [d for d in _divisors_desc(C) if d == C or d % sub == 0]
    else:
        bc_cands = _divisors_desc(C)
    bb_cands = _divisors_desc(B)

    best = None
    for bc in bc_cands:
        for bb in bb_cands:                        # descending: first fit = largest
            if live_bytes(bb, bc) <= budget_bytes:
                if best is None or bb * bc > best[0] * best[1]:
                    best = (bb, bc)
                break
    if best is None:
        best = (1, bc_cands[-1])                   # smallest valid; limit stretches
    bb, bc = best

    # Keep >= 2 grid tiles so the "parallel" axes can shard across v7x's two
    # TensorCores (costs one extra ~0.35us grid step on v5e/v6e: noise).
    if (B // bb) * (C // bc) < 2:
        if bb > 1:
            bb = next(d for d in _divisors_desc(B) if d < bb)
        else:
            smaller_bc = [d for d in bc_cands if d < bc]
            if smaller_bc:
                bc = smaller_bc[0]

    return bb, bc, live_bytes(bb, bc)


# ---------------------------------------------------------------------------
# Wrapper
# ---------------------------------------------------------------------------

def _reference(x):
    return jnp.swapaxes(jnp.concatenate([x] * 4, axis=1), -1, -2)


def _vmem_capacity_bytes():
    try:
        info = pltpu.get_tpu_info()
        return int(getattr(info, "vmem_capacity_bytes", 64 * 1024 * 1024))
    except Exception:
        return 64 * 1024 * 1024        # conservative: v7x per-TensorCore VMEM


def cat4_transpose(x, *, fold_wh=None, vmem_budget_bytes=None,
                   min_pallas_bytes=256 * 1024):
    """Pallas equivalent of torch.transpose(torch.cat([x]*4, dim=1), -1, -2)."""
    B, C, H, W = x.shape
    itemsize = jnp.dtype(x.dtype).itemsize
    in_bytes_total = B * C * H * W * itemsize

    # Tiny-tensor fast path: below a few hundred KiB the pallas_call fixed
    # cost and (8,128) padding dominate; XLA's fused broadcast+transpose wins.
    if in_bytes_total < min_pallas_bytes:
        return _reference(x)

    vmem_cap = _vmem_capacity_bytes()
    if vmem_budget_bytes is None:
        # Live (double-buffered) block budget: ~half physical VMEM, capped.
        #   v5e/v6e (128 MiB) -> 48 MiB, v7x (64 MiB per TC) -> 32 MiB.
        vmem_budget_bytes = min(48 * 1024 * 1024, vmem_cap // 2)

    if fold_wh is None:
        # Lane-dense output is the biggest lever when H (the output's last
        # dim) is not already a multiple of 128 (masked vst + sparse DMA).
        fold_wh = (H % 128) != 0

    vmem_limit_cap = min(96 * 1024 * 1024, (vmem_cap * 3) // 4)

    def build(fold):
        bb, bc, live = _plan_blocks(B, C, H, W, x.dtype, fold, vmem_budget_bytes)
        nb, nc = B // bb, C // bc
        needed = live + (1 << 20)                  # ~1 MiB misc headroom
        if needed > vmem_limit_cap:
            return None                            # single (H, W) plane too large
        vmem_limit = int(max(needed, 4 * 1024 * 1024))
        cost = pl.CostEstimate(flops=0, transcendentals=0,
                               bytes_accessed=5 * in_bytes_total)
        params = pltpu.CompilerParams(
            dimension_semantics=("parallel", "parallel"),
            vmem_limit_bytes=vmem_limit)
        in_spec = pl.BlockSpec((bb, bc, H, W), lambda i, j: (i, j, 0, 0))
        if fold:
            out_shape = jax.ShapeDtypeStruct((B, 4, C, W * H), x.dtype)
            out_spec = pl.BlockSpec((bb, 4, bc, W * H),
                                    lambda i, j: (i, 0, j, 0))
            kernel = _cat4_transpose_kernel_folded
        else:
            out_shape = jax.ShapeDtypeStruct((B, 4, C, W, H), x.dtype)
            out_spec = pl.BlockSpec((bb, 4, bc, W, H),
                                    lambda i, j: (i, 0, j, 0, 0))
            kernel = _cat4_transpose_kernel
        return pl.pallas_call(
            kernel,
            out_shape=out_shape,
            grid_spec=pltpu.PrefetchScalarGridSpec(
                num_scalar_prefetch=0,
                grid=(nb, nc),
                in_specs=[in_spec],
                out_specs=out_spec),
            compiler_params=params,
            cost_estimate=cost)

    if fold_wh:
        call = build(True)
        if call is not None:
            try:
                out = call(x)
                return out.reshape(B, 4 * C, W, H)   # free view (4, C adjacent)
            except Exception:
                # Lowering-robustness fallback (effective in eager mode): the
                # in-kernel (W, H) -> (W*H) relayout may be unsupported for
                # exotic shapes/toolchains; fall back to the unfolded store.
                pass

    call = build(False)
    if call is None:
        # TODO(synk): tile the (H, W) plane itself when a single plane exceeds
        # the VMEM budget; fall back to XLA for now.
        return _reference(x)
    out = call(x)
    return out.reshape(B, 4 * C, W, H)


# ---------------------------------------------------------------------------
# Self-test
# ---------------------------------------------------------------------------

if __name__ == "__main__":
    key = jax.random.PRNGKey(0)
    k1, k2, k3, k4 = jax.random.split(key, 4)

    # 1) Primary small shape, forced through the Pallas (lane-dense) path.
    x1 = jax.random.normal(k1, (2, 4, 16, 16), dtype=jnp.float32)
    out1 = jax.block_until_ready(cat4_transpose(x1, min_pallas_bytes=0))
    assert out1.shape == (2, 16, 16, 16), out1.shape
    assert out1.dtype == jnp.float32
    assert jnp.allclose(out1, _reference(x1)), "mismatch (2,4,16,16)"

    # 2) Exact spec shape torch.randn(3, 3, 3, 6): tiny-tensor fast path.
    x2 = jax.random.normal(k2, (3, 3, 3, 6), dtype=jnp.float32)
    out2 = jax.block_until_ready(cat4_transpose(x2))
    assert out2.shape == (3, 12, 6, 3), out2.shape
    assert jnp.allclose(out2, _reference(x2)), "mismatch (3,3,3,6)"

    # 3) Default routing (>= 256 KiB -> Pallas; H % 128 != 0 -> folded output).
    x3 = jax.random.normal(k3, (4, 8, 64, 128), dtype=jnp.float32)
    out3 = jax.block_until_ready(cat4_transpose(x3))
    assert out3.shape == (4, 32, 128, 64), out3.shape
    assert jnp.allclose(out3, _reference(x3)), "mismatch (4,8,64,128)"

    # 4) Unfolded path (H already a multiple of 128) with a deliberately tight
    #    VMEM budget to exercise multi-block B/C tiling (grid (2, 2)).
    x4 = jax.random.normal(k4, (2, 8, 128, 16), dtype=jnp.float32)
    out4 = jax.block_until_ready(
        cat4_transpose(x4, min_pallas_bytes=0,
                       vmem_budget_bytes=1 * 1024 * 1024))
    assert out4.shape == (2, 32, 16, 128), out4.shape
    assert jnp.allclose(out4, _reference(x4)), "mismatch (2,8,128,16)"

    print("KERNEL_OK")
</pallas_src>

<mosaic_0001>
module attributes {stable_mosaic.version = 11 : i64} {
  func.func @_cat4_transpose_kernel_folded(%arg0: i32, %arg1: i32, %arg2: memref<1x4x16x16xf32, #tpu.memory_space<vmem>>, %arg3: memref<1x4x4x256xf32, #tpu.memory_space<vmem>>) attributes {dimension_semantics = [#tpu.dimension_semantics<parallel>, #tpu.dimension_semantics<parallel>], iteration_bounds = array<i64: 2, 1>, scalar_prefetch = 0 : i64, scratch_operands = 0 : i64, tpu.core_type = #tpu.core_type<tc>, window_params = [{transform_indices = @transform_0, window_bounds = array<i64: 1, 4, 16, 16>}, {transform_indices = @transform_1, window_bounds = array<i64: 1, 4, 4, 256>}]} {
    %c0 = arith.constant 0 : index
    %c0_0 = arith.constant 0 : index
    %c0_1 = arith.constant 0 : index
    %c0_2 = arith.constant 0 : index
    %0 = vector.load %arg2[%c0, %c0_0, %c0_1, %c0_2] : memref<1x4x16x16xf32, #tpu.memory_space<vmem>>, vector<1x4x16x16xf32>
    %1 = tpu.transpose %0, [0, 1, 3, 2] : vector<1x4x16x16xf32> -> vector<1x4x16x16xf32>
    %2 = vector.shape_cast %1 : vector<1x4x16x16xf32> to vector<1x4x256xf32>
    %c0_3 = arith.constant 0 : index
    %c0_4 = arith.constant 0 : index
    %c0_5 = arith.constant 0 : index
    %c0_6 = arith.constant 0 : index
    %3 = vector.load %arg3[%c0_3, %c0_4, %c0_5, %c0_6] : memref<1x4x4x256xf32, #tpu.memory_space<vmem>>, vector<1x1x4x256xf32>
    %4 = vector.shape_cast %3 : vector<1x1x4x256xf32> to vector<1x4x256xf32>
    %5 = vector.shape_cast %2 : vector<1x4x256xf32> to vector<1x1x4x256xf32>
    tpu.vector_store %arg3[%c0_3, %c0_4, %c0_5, %c0_6], %5 {strides = array<i32>} : memref<1x4x4x256xf32, #tpu.memory_space<vmem>>, vector<1x1x4x256xf32>,
    %c0_7 = arith.constant 0 : index
    %c1 = arith.constant 1 : index
    %c0_8 = arith.constant 0 : index
    %c0_9 = arith.constant 0 : index
    %6 = vector.load %arg3[%c0_7, %c1, %c0_8, %c0_9] : memref<1x4x4x256xf32, #tpu.memory_space<vmem>>, vector<1x1x4x256xf32>
    %7 = vector.shape_cast %6 : vector<1x1x4x256xf32> to vector<1x4x256xf32>
    %8 = vector.shape_cast %2 : vector<1x4x256xf32> to vector<1x1x4x256xf32>
    tpu.vector_store %arg3[%c0_7, %c1, %c0_8, %c0_9], %8 {strides = array<i32>} : memref<1x4x4x256xf32, #tpu.memory_space<vmem>>, vector<1x1x4x256xf32>,
    %c0_10 = arith.constant 0 : index
    %c2 = arith.constant 2 : index
    %c0_11 = arith.constant 0 : index
    %c0_12 = arith.constant 0 : index
    %9 = vector.load %arg3[%c0_10, %c2, %c0_11, %c0_12] : memref<1x4x4x256xf32, #tpu.memory_space<vmem>>, vector<1x1x4x256xf32>
    %10 = vector.shape_cast %9 : vector<1x1x4x256xf32> to vector<1x4x256xf32>
    %11 = vector.shape_cast %2 : vector<1x4x256xf32> to vector<1x1x4x256xf32>
    tpu.vector_store %arg3[%c0_10, %c2, %c0_11, %c0_12], %11 {strides = array<i32>} : memref<1x4x4x256xf32, #tpu.memory_space<vmem>>, vector<1x1x4x256xf32>,
    %c0_13 = arith.constant 0 : index
    %c3 = arith.constant 3 : index
    %c0_14 = arith.constant 0 : index
    %c0_15 = arith.constant 0 : index
    %12 = vector.load %arg3[%c0_13, %c3, %c0_14, %c0_15] : memref<1x4x4x256xf32, #tpu.memory_space<vmem>>, vector<1x1x4x256xf32>
    %13 = vector.shape_cast %12 : vector<1x1x4x256xf32> to vector<1x4x256xf32>
    %14 = vector.shape_cast %2 : vector<1x4x256xf32> to vector<1x1x4x256xf32>
    tpu.vector_store %arg3[%c0_13, %c3, %c0_14, %c0_15], %14 {strides = array<i32>} : memref<1x4x4x256xf32, #tpu.memory_space<vmem>>, vector<1x1x4x256xf32>,
    return
  }
  func.func @transform_0(%arg0: i32, %arg1: i32) -> (i32, i32, i32, i32) {
    %c0_i32 = arith.constant 0 : i32
    %c0_i32_0 = arith.constant 0 : i32
    %c0_i32_1 = arith.constant 0 : i32
    return %arg0, %arg1, %c0_i32, %c0_i32_0 : i32, i32, i32, i32
  }
  func.func @transform_1(%arg0: i32, %arg1: i32) -> (i32, i32, i32, i32) {
    %c0_i32 = arith.constant 0 : i32
    %c0_i32_0 = arith.constant 0 : i32
    %c0_i32_1 = arith.constant 0 : i32
    return %arg0, %c0_i32, %arg1, %c0_i32_0 : i32, i32, i32, i32
  }
}

module attributes {stable_mosaic.version = 11 : i64} {
  func.func @_cat4_transpose_kernel(%arg0: i32, %arg1: i32, %arg2: memref<1x4x16x16xf32, #tpu.memory_space<vmem>>, %arg3: memref<1x4x4x16x16xf32, #tpu.memory_space<vmem>>) attributes {dimension_semantics = [#tpu.dimension_semantics<parallel>, #tpu.dimension_semantics<parallel>], iteration_bounds = array<i64: 2, 1>, scalar_prefetch = 0 : i64, scratch_operands = 0 : i64, tpu.core_type = #tpu.core_type<tc>, window_params = [{transform_indices = @transform_0, window_bounds = array<i64: 1, 4, 16, 16>}, {transform_indices = @transform_1, window_bounds = array<i64: 1, 4, 4, 16, 16>}]} {
    %c0 = arith.constant 0 : index
    %c0_0 = arith.constant 0 : index
    %c0_1 = arith.constant 0 : index
    %c0_2 = arith.constant 0 : index
    %0 = vector.load %arg2[%c0, %c0_0, %c0_1, %c0_2] : memref<1x4x16x16xf32, #tpu.memory_space<vmem>>, vector<1x4x16x16xf32>
    %1 = tpu.transpose %0, [0, 1, 3, 2] : vector<1x4x16x16xf32> -> vector<1x4x16x16xf32>
    %c0_3 = arith.constant 0 : index
    %c0_4 = arith.constant 0 : index
    %c0_5 = arith.constant 0 : index
    %c0_6 = arith.constant 0 : index
    %c0_7 = arith.constant 0 : index
    %2 = vector.load %arg3[%c0_3, %c0_4, %c0_5, %c0_6, %c0_7] : memref<1x4x4x16x16xf32, #tpu.memory_space<vmem>>, vector<1x1x4x16x16xf32>
    %3 = vector.shape_cast %2 : vector<1x1x4x16x16xf32> to vector<1x4x16x16xf32>
    %4 = vector.shape_cast %1 : vector<1x4x16x16xf32> to vector<1x1x4x16x16xf32>
    tpu.vector_store %arg3[%c0_3, %c0_4, %c0_5, %c0_6, %c0_7], %4 {strides = array<i32>} : memref<1x4x4x16x16xf32, #tpu.memory_space<vmem>>, vector<1x1x4x16x16xf32>,
    %c0_8 = arith.constant 0 : index
    %c1 = arith.constant 1 : index
    %c0_9 = arith.constant 0 : index
    %c0_10 = arith.constant 0 : index
    %c0_11 = arith.constant 0 : index
    %5 = vector.load %arg3[%c0_8, %c1, %c0_9, %c0_10, %c0_11] : memref<1x4x4x16x16xf32, #tpu.memory_space<vmem>>, vector<1x1x4x16x16xf32>
    %6 = vector.shape_cast %5 : vector<1x1x4x16x16xf32> to vector<1x4x16x16xf32>
    %7 = vector.shape_cast %1 : vector<1x4x16x16xf32> to vector<1x1x4x16x16xf32>
    tpu.vector_store %arg3[%c0_8, %c1, %c0_9, %c0_10, %c0_11], %7 {strides = array<i32>} : memref<1x4x4x16x16xf32, #tpu.memory_space<vmem>>, vector<1x1x4x16x16xf32>,
    %c0_12 = arith.constant 0 : index
    %c2 = arith.constant 2 : index
    %c0_13 = arith.constant 0 : index
    %c0_14 = arith.constant 0 : index
    %c0_15 = arith.constant 0 : index
    %8 = vector.load %arg3[%c0_12, %c2, %c0_13, %c0_14, %c0_15] : memref<1x4x4x16x16xf32, #tpu.memory_space<vmem>>, vector<1x1x4x16x16xf32>
    %9 = vector.shape_cast %8 : vector<1x1x4x16x16xf32> to vector<1x4x16x16xf32>
    %10 = vector.shape_cast %1 : vector<1x4x16x16xf32> to vector<1x1x4x16x16xf32>
    tpu.vector_store %arg3[%c0_12, %c2, %c0_13, %c0_14, %c0_15], %10 {strides = array<i32>} : memref<1x4x4x16x16xf32, #tpu.memory_space<vmem>>, vector<1x1x4x16x16xf32>,
    %c0_16 = arith.constant 0 : index
    %c3 = arith.constant 3 : index
    %c0_17 = arith.constant 0 : index
    %c0_18 = arith.constant 0 : index
    %c0_19 = arith.constant 0 : index
    %11 = vector.load %arg3[%c0_16, %c3, %c0_17, %c0_18, %c0_19] : memref<1x4x4x16x16xf32, #tpu.memory_space<vmem>>, vector<1x1x4x16x16xf32>
    %12 = vector.shape_cast %11 : vector<1x1x4x16x16xf32> to vector<1x4x16x16xf32>
    %13 = vector.shape_cast %1 : vector<1x4x16x16xf32> to vector<1x1x4x16x16xf32>
    tpu.vector_store %arg3[%c0_16, %c3, %c0_17, %c0_18, %c0_19], %13 {strides = array<i32>} : memref<1x4x4x16x16xf32, #tpu.memory_space<vmem>>, vector<1x1x4x16x16xf32>,
    return
  }
  func.func @transform_0(%arg0: i32, %arg1: i32) -> (i32, i32, i32, i32) {
    %c0_i32 = arith.constant 0 : i32
    %c0_i32_0 = arith.constant 0 : i32
    %c0_i32_1 = arith.constant 0 : i32
    return %arg0, %arg1, %c0_i32, %c0_i32_0 : i32, i32, i32, i32
  }
  func.func @transform_1(%arg0: i32, %arg1: i32) -> (i32, i32, i32, i32, i32) {
    %c0_i32 = arith.constant 0 : i32
    %c0_i32_0 = arith.constant 0 : i32
    %c0_i32_1 = arith.constant 0 : i32
    %c0_i32_2 = arith.constant 0 : i32
    return %arg0, %c0_i32, %arg1, %c0_i32_0, %c0_i32_1 : i32, i32, i32, i32, i32
  }
}

</mosaic_0001>

<llo_original>
// kernel: tpu_custom_call.1
$region0: #{tpu_custom_call.1}
  #allocation0 [shape = 'u32[]', space=smem, size = 0x4, offset = 0x4, fixed_abs, tag = 'smem constant byte address 0x4 - core index']
  #allocation1 [shape = 'u32[72,128]{1,0:T(1,128)}', space=vmem, size = 0x9000, scoped, tag = 'internal scratch']
  %s0 = inlined_call_operand.hbm [shape: f32[2,4,16,16], index: 0, kind: input, shape index: {}]
  %s1 = inlined_call_operand.hbm [shape: f32[2,4,4,256], index: 1, kind: output, shape index: {}]
  %s2 = sld [smem:[#allocation0]]
  $region41: #{tpu_custom_call.1} parent=0
    _
  %s4 = ssub.s32 1, %s2
  %s5 = scalar_select 0, %s4, %s2
  $region1: #{tpu_custom_call.1} parent=0
    #allocation2 [shape = 'u8[65536]{0}', space=vmem, size = 0x10000, scoped, tag = 'input window, operand 0']
    #allocation3 [shape = 's32[2]{0}', space=sflag, size = 0x8, scoped, tag = 'scoped memory for tpu_custom_call.1']
    #allocation4 [shape = 's32[2]{0}', space=sflag, size = 0x8, scoped, tag = 'scoped memory for tpu_custom_call.1']
    #allocation5 [shape = 'u8[32768]{0}', space=vmem, size = 0x8000, scoped, tag = 'output window, operand 0']
    %6 = vsyncpa [#allocation3], 0
    %s7 = scalar_lea.sflag [#allocation3], 1
    %8 = vsyncpa %s7, 0
    %9 = vsyncpa [#allocation4], 0
    %s10 = scalar_lea.sflag [#allocation4], 1
    %11 = vsyncpa %s10, 0
    loop: start=0, step=1, limit=4
    $region2: #{tpu_custom_call.1} parent=1 // loop_pre_header
      _
    $region3: #{tpu_custom_call.1} parent=1 // loop_header
      %s13 = sphi 0, %s17
      %p14 = scmp.ge.s32.totalorder %s13, 4
      %s20 = sphi 0, %s32
      %s21 = sphi 0, %s28
      %s22 = sphi 0, %s20
      %s23 = sphi 0, %s21
      %s24 = sphi 0, %s22
      %s25 = sphi 0, %s23
      %s37 = sphi 0, %s39
      %s40 = sphi 0, %s37
      %s41 = sphi 0, %s40
      %s57 = sphi 0, %s41
      %s65 = sphi 0, %s67
      %s68 = sphi 0, %s65
      %s69 = sphi 0, %s68
      %s85 = sphi 0, %s69
    $region4: #{tpu_custom_call.1} parent=1 // loop_header_branch
      %16 = sbr.rel (%p14) target = $region8
    $region5: #{tpu_custom_call.1} parent=1 // loop_body
      %s18 = ssub.s32 %s13, 1
      %s19 = ssub.s32 %s13, 2
      %s26 = sadd.s32 1, %s21
      %p27 = scmp.ge.s32.totalorder %s26, 1
      %s28 = scalar_select %p27, 0, %s26
      %s29 = sadd.s32 1, %s20
      %s30 = scalar_select %p27, %s29, %s20
      %p31 = scmp.ge.s32.totalorder %s30, 2
      %s32 = scalar_select %p31, 0, %s30
      %s33 = ssub.s32 %s20, %s32
      %s34 = ssub.s32 %s21, %s28
      %s35 = sor.u32 %s33, %s34
      %p36 = scmp.eq.s32.totalorder %s35, 0
      %s38 = sadd.s32 %s37, 1
      %s39 = scalar_select %p36, %s37, %s38
      %p42 = pneg %p36
      %p43 = scmp.eq.s32.totalorder %s13, 1
      %p44 = por %p42, %p43
      %p45 = scmp.ne.s32.totalorder %s37, %s40
      %p46 = scmp.eq.s32.totalorder %s13, 0
      %p47 = por %p45, %p46
      %p48 = scmp.ne.s32.totalorder %s37, %s40
      %p49 = scmp.eq.s32.totalorder %s18, 1
      %p50 = por %p48, %p49
      %p51 = scmp.ne.s32.totalorder %s40, %s41
      %p52 = scmp.eq.s32.totalorder %s18, 0
      %p53 = por %p51, %p52
      %p54 = scmp.ne.s32.totalorder %s40, %s41
      %p55 = scmp.eq.s32.totalorder %s19, 1
      %p56 = por %p54, %p55
      %p58 = scmp.ne.s32.totalorder %s41, %s57
      %p59 = scmp.eq.s32.totalorder %s19, 0
      %p60 = por %p58, %p59
      %s61 = ssub.s32 %s20, %s32
      %s62 = ssub.s32 %s21, %s28
      %s63 = sor.u32 %s61, %s62
      %p64 = scmp.eq.s32.totalorder %s63, 0
      %s66 = sadd.s32 %s65, 1
      %s67 = scalar_select %p64, %s65, %s66
      %p70 = pneg %p64
      %p71 = scmp.eq.s32.totalorder %s13, 1
      %p72 = por %p70, %p71
      %p73 = scmp.ne.s32.totalorder %s65, %s68
      %p74 = scmp.eq.s32.totalorder %s13, 0
      %p75 = por %p73, %p74
      %p76 = scmp.ne.s32.totalorder %s65, %s68
      %p77 = scmp.eq.s32.totalorder %s18, 1
      %p78 = por %p76, %p77
      %p79 = scmp.ne.s32.totalorder %s68, %s69
      %p80 = scmp.eq.s32.totalorder %s18, 0
      %p81 = por %p79, %p80
      %p82 = scmp.ne.s32.totalorder %s68, %s69
      %p83 = scmp.eq.s32.totalorder %s19, 1
      %p84 = por %p82, %p83
      %p86 = scmp.ne.s32.totalorder %s69, %s85
      %p87 = scmp.eq.s32.totalorder %s19, 0
      %p88 = por %p86, %p87
      %p89 = scmp.le.s32.totalorder 1, %s13
      %p90 = scmp.lt.s32.totalorder %s13, 3
      %p91 = pnand %p89, %p90
      %p92 = pneg %p91
      // Predicated region
      $region9: #{tpu_custom_call.1} parent=5 // pred_check
        _
      $region10: #{tpu_custom_call.1} parent=5 // pred_check_branch
        %94 = sbr.rel (%p91) target = $region12
      $region11: #{tpu_custom_call.1} parent=5 // pred_region
        %s95 = ssub.s32 %s13, 1
      $region12: #{tpu_custom_call.1} parent=5 // pred_fallthru
        _
      %p96 = scmp.lt.s32.totalorder %s13, 2
      // Predicated region
      $region13: #{tpu_custom_call.1} parent=5 // pred_check
        %p97 = pneg %p96
      $region14: #{tpu_custom_call.1} parent=5 // pred_check_branch
        %99 = sbr.rel (%p97) target = $region16
      $region15: #{tpu_custom_call.1} parent=5 // pred_region
        // Predicated region
        $region17: #{tpu_custom_call.1} parent=15 // pred_check
          %p100 = pneg %p47
        $region18: #{tpu_custom_call.1} parent=15 // pred_check_branch
          %102 = sbr.rel (%p100) target = $region20
        $region19: #{tpu_custom_call.1} parent=15 // pred_region
          %s103 = sand.u32 %s37, 1
          %s104 = scalar_lea.sflag [#allocation3], %s103
          %s105 = sand.u32 %s37, 1
          %s106 = smul.addr %s105, 64
          %s107 = scalar_lea.vmem [#allocation2], %s106
          %s108 = smul.u32 4, %s21
          %110 = vsyncadd %s104, 0
          %s111 = smul.addr %s108, 2
          %s112 = smul.addr %s20, 8
          %s113 = sadd.s32 %s111, %s112
          %s114 = smul.addr %s113, 8
          %s115 = scalar_lea.hbm %s0, %s114
          %s116 = sshll.u32 %s115, 4
          %s117 = int_to_ptr.hbm [resolvable:$true] %s116
          %s118 = sshll.u32 %s107, 4
          %s119 = int_to_ptr.vmem [resolvable:$true] %s118
          %124 = dma.hbm_to_vmem [thread:$0]  %s117, 1024, %s119, %s104, 128, 128, 8
        $region20: #{tpu_custom_call.1} parent=15 // pred_fallthru
          _
      $region16: #{tpu_custom_call.1} parent=5 // pred_fallthru
        _
      %p125 = scmp.le.s32.totalorder 1, %s13
      %p126 = scmp.lt.s32.totalorder %s13, 3
      %p127 = pnand %p125, %p126
      %p128 = pneg %p127
      // Predicated region
      $region21: #{tpu_custom_call.1} parent=5 // pred_check
        _
      $region22: #{tpu_custom_call.1} parent=5 // pred_check_branch
        %130 = sbr.rel (%p127) target = $region24
      $region23: #{tpu_custom_call.1} parent=5 // pred_region
        %s131 = ssub.s32 %s13, 1
        %s132 = sand.u32 %s40, 1
        %s133 = scalar_lea.sflag [#allocation3], %s132
        %s134 = sand.u32 %s40, 1
        %s135 = smul.addr %s134, 64
        %s136 = scalar_lea.vmem [#allocation2], %s135
        // Predicated region
        $region25: #{tpu_custom_call.1} parent=23 // pred_check
          %p137 = pneg %p53
        $region26: #{tpu_custom_call.1} parent=23 // pred_check_branch
          %139 = sbr.rel (%p137) target = $region28
        $region27: #{tpu_custom_call.1} parent=23 // pred_region
          %141 = dma.done %s133, 1024
        $region28: #{tpu_custom_call.1} parent=23 // pred_fallthru
          _
        %s142 = sand.u32 %s40, 1
        %s143 = scalar_lea.sflag [#allocation3], %s142
        %s144 = sand.u32 %s40, 1
        %s145 = smul.addr %s144, 64
        %s146 = scalar_lea.vmem [#allocation2], %s145
        %p147 = pneg %p53
        %p148 = pneg %p50
        %p149 = pneg %p81
        %p150 = pneg %p78
        %s151 = sand.u32 %s68, 1
        %s152 = scalar_lea.sflag [#allocation4], %s151
        %s153 = sand.u32 %s68, 1
        %s154 = smul.addr %s153, 32
        %s155 = scalar_lea.vmem [#allocation5], %s154
        %s156 = smul.u32 4, %s23
        %v157 = vld [vmem:[%s136] sm:$0xff]
        %v158 = vld [vmem:[%s136 + $0x8] sm:$0xff]
        %v159 = vld [vmem:[%s136 + $0x10] sm:$0xff]
        %v160 = vld [vmem:[%s136 + $0x18] sm:$0xff]
        %v161 = vld [vmem:[%s136 + $0x20] sm:$0xff]
        %v162 = vld [vmem:[%s136 + $0x28] sm:$0xff]
        %v163 = vld [vmem:[%s136 + $0x30] sm:$0xff]
        %v164 = vld [vmem:[%s136 + $0x38] sm:$0xff]
        %165 = vxpose.xlu0.b32.start [1/16] %v157, 128
        %166 = vxpose.xlu0.b32.cont [2/16] %v158, 128
        %167 = vxpose.xlu0.b32.cont [3/16] 0.0, 128
        %168 = vxpose.xlu0.b32.cont [4/16] 0.0, 128
        %169 = vxpose.xlu0.b32.cont [5/16] 0.0, 128
        %170 = vxpose.xlu0.b32.cont [6/16] 0.0, 128
        %171 = vxpose.xlu0.b32.cont [7/16] 0.0, 128
        %172 = vxpose.xlu0.b32.cont [8/16] 0.0, 128
        %173 = vxpose.xlu0.b32.cont [9/16] 0.0, 128
        %174 = vxpose.xlu0.b32.cont [10/16] 0.0, 128
        %175 = vxpose.xlu0.b32.cont [11/16] 0.0, 128
        %176 = vxpose.xlu0.b32.cont [12/16] 0.0, 128
        %177 = vxpose.xlu0.b32.cont [13/16] 0.0, 128
        %178 = vxpose.xlu0.b32.cont [14/16] 0.0, 128
        %179 = vxpose.xlu0.b32.cont [15/16] 0.0, 128
        %180 = vxpose.xlu0.b32.end [16/16] 0.0, 128
        %v181 = vpop.trf.xlu0
        %v182 = vpop.trf.xlu0
        %v183 = vpop.trf.xlu0
        %v184 = vpop.trf.xlu0
        %v185 = vpop.trf.xlu0
        %v186 = vpop.trf.xlu0
        %v187 = vpop.trf.xlu0
        %v188 = vpop.trf.xlu0
        %v189 = vpop.trf.xlu0
        %v190 = vpop.trf.xlu0
        %v191 = vpop.trf.xlu0
        %v192 = vpop.trf.xlu0
        %v193 = vpop.trf.xlu0
        %v194 = vpop.trf.xlu0
        %v195 = vpop.trf.xlu0
        %v196 = vpop.trf.xlu0
        %197 = vxpose.xlu0.b32.start [1/16] %v159, 128
        %198 = vxpose.xlu0.b32.cont [2/16] %v160, 128
        %199 = vxpose.xlu0.b32.cont [3/16] 0.0, 128
        %200 = vxpose.xlu0.b32.cont [4/16] 0.0, 128
        %201 = vxpose.xlu0.b32.cont [5/16] 0.0, 128
        %202 = vxpose.xlu0.b32.cont [6/16] 0.0, 128
        %203 = vxpose.xlu0.b32.cont [7/16] 0.0, 128
        %204 = vxpose.xlu0.b32.cont [8/16] 0.0, 128
        %205 = vxpose.xlu0.b32.cont [9/16] 0.0, 128
        %206 = vxpose.xlu0.b32.cont [10/16] 0.0, 128
        %207 = vxpose.xlu0.b32.cont [11/16] 0.0, 128
        %208 = vxpose.xlu0.b32.cont [12/16] 0.0, 128
        %209 = vxpose.xlu0.b32.cont [13/16] 0.0, 128
        %210 = vxpose.xlu0.b32.cont [14/16] 0.0, 128
        %211 = vxpose.xlu0.b32.cont [15/16] 0.0, 128
        %212 = vxpose.xlu0.b32.end [16/16] 0.0, 128
        %v213 = vpop.trf.xlu0
        %v214 = vpop.trf.xlu0
        %v215 = vpop.trf.xlu0
        %v216 = vpop.trf.xlu0
        %v217 = vpop.trf.xlu0
        %v218 = vpop.trf.xlu0
        %v219 = vpop.trf.xlu0
        %v220 = vpop.trf.xlu0
        %v221 = vpop.trf.xlu0
        %v222 = vpop.trf.xlu0
        %v223 = vpop.trf.xlu0
        %v224 = vpop.trf.xlu0
        %v225 = vpop.trf.xlu0
        %v226 = vpop.trf.xlu0
        %v227 = vpop.trf.xlu0
        %v228 = vpop.trf.xlu0
        %229 = vxpose.xlu0.b32.start [1/16] %v161, 128
        %230 = vxpose.xlu0.b32.cont [2/16] %v162, 128
        %231 = vxpose.xlu0.b32.cont [3/16] 0.0, 128
        %232 = vxpose.xlu0.b32.cont [4/16] 0.0, 128
        %233 = vxpose.xlu0.b32.cont [5/16] 0.0, 128
        %234 = vxpose.xlu0.b32.cont [6/16] 0.0, 128
        %235 = vxpose.xlu0.b32.cont [7/16] 0.0, 128
        %236 = vxpose.xlu0.b32.cont [8/16] 0.0, 128
        %237 = vxpose.xlu0.b32.cont [9/16] 0.0, 128
        %238 = vxpose.xlu0.b32.cont [10/16] 0.0, 128
        %239 = vxpose.xlu0.b32.cont [11/16] 0.0, 128
        %240 = vxpose.xlu0.b32.cont [12/16] 0.0, 128
        %241 = vxpose.xlu0.b32.cont [13/16] 0.0, 128
        %242 = vxpose.xlu0.b32.cont [14/16] 0.0, 128
        %243 = vxpose.xlu0.b32.cont [15/16] 0.0, 128
        %244 = vxpose.xlu0.b32.end [16/16] 0.0, 128
        %v245 = vpop.trf.xlu0
        %v246 = vpop.trf.xlu0
        %v247 = vpop.trf.xlu0
        %v248 = vpop.trf.xlu0
        %v249 = vpop.trf.xlu0
        %v250 = vpop.trf.xlu0
        %v251 = vpop.trf.xlu0
        %v252 = vpop.trf.xlu0
        %v253 = vpop.trf.xlu0
        %v254 = vpop.trf.xlu0
        %v255 = vpop.trf.xlu0
        %v256 = vpop.trf.xlu0
        %v257 = vpop.trf.xlu0
        %v258 = vpop.trf.xlu0
        %v259 = vpop.trf.xlu0
        %v260 = vpop.trf.xlu0
        %261 = vxpose.xlu0.b32.start [1/16] %v163, 128
        %262 = vxpose.xlu0.b32.cont [2/16] %v164, 128
        %263 = vxpose.xlu0.b32.cont [3/16] 0.0, 128
        %264 = vxpose.xlu0.b32.cont [4/16] 0.0, 128
        %265 = vxpose.xlu0.b32.cont [5/16] 0.0, 128
        %266 = vxpose.xlu0.b32.cont [6/16] 0.0, 128
        %267 = vxpose.xlu0.b32.cont [7/16] 0.0, 128
        %268 = vxpose.xlu0.b32.cont [8/16] 0.0, 128
        %269 = vxpose.xlu0.b32.cont [9/16] 0.0, 128
        %270 = vxpose.xlu0.b32.cont [10/16] 0.0, 128
        %271 = vxpose.xlu0.b32.cont [11/16] 0.0, 128
        %272 = vxpose.xlu0.b32.cont [12/16] 0.0, 128
        %273 = vxpose.xlu0.b32.cont [13/16] 0.0, 128
        %274 = vxpose.xlu0.b32.cont [14/16] 0.0, 128
        %275 = vxpose.xlu0.b32.cont [15/16] 0.0, 128
        %276 = vxpose.xlu0.b32.end [16/16] 0.0, 128
        %v277 = vpop.trf.xlu0
        %v278 = vpop.trf.xlu0
        %v279 = vpop.trf.xlu0
        %v280 = vpop.trf.xlu0
        %v281 = vpop.trf.xlu0
        %v282 = vpop.trf.xlu0
        %v283 = vpop.trf.xlu0
        %v284 = vpop.trf.xlu0
        %v285 = vpop.trf.xlu0
        %v286 = vpop.trf.xlu0
        %v287 = vpop.trf.xlu0
        %v288 = vpop.trf.xlu0
        %v289 = vpop.trf.xlu0
        %v290 = vpop.trf.xlu0
        %v291 = vpop.trf.xlu0
        %v292 = vpop.trf.xlu0
        %v293 = vrot.slane %v245, 4
        %vm294 = vcmask 1047556
        %v295 = vsel %vm294, %v293, %v181
        %v296 = vrot.slane %v181, 4
        %v297 = vsel %vm294, %v245, %v296
        %v299 = vunpack.c.l.s4 1983009808
        %v300 = vunpack.c.0.s8 %v299
        %v301 = vperm.slane %v295, %v300
        %v303 = vunpack.c.l.s4 1983009808
        %v304 = vunpack.c.0.s8 %v303
        %v305 = vperm.slane %v297, %v304
        %v306 = vrot.slane %v277, 4
        %v307 = vsel %vm294, %v306, %v213
        %v308 = vrot.slane %v213, 4
        %v309 = vsel %vm294, %v277, %v308
        %v311 = vunpack.c.l.s4 1983009808
        %v312 = vunpack.c.0.s8 %v311
        %v313 = vperm.slane %v307, %v312
        %v315 = vunpack.c.l.s4 1983009808
        %v316 = vunpack.c.0.s8 %v315
        %v317 = vperm.slane %v309, %v316
        %v318 = vrot.slane %v313, 4
        %v319 = vsel %vm294, %v318, %v301
        %v320 = vrot.slane %v301, 4
        %v321 = vsel %vm294, %v313, %v320
        %v323 = vunpack.c.l.s4 1934713408
        %v324 = vunpack.c.0.s8 %v323
        %v325 = vperm.slane %v319, %v324
        %v327 = vunpack.c.l.s4 1934713408
        %v328 = vunpack.c.0.s8 %v327
        %v329 = vperm.slane %v321, %v328
        %v330 = vrot.slane %v317, 4
        %v331 = vsel %vm294, %v330, %v305
        %v332 = vrot.slane %v305, 4
        %v333 = vsel %vm294, %v317, %v332
        %v335 = vunpack.c.l.s4 1934713408
        %v336 = vunpack.c.0.s8 %v335
        %v337 = vperm.slane %v331, %v336
        %v339 = vunpack.c.l.s4 1934713408
        %v340 = vunpack.c.0.s8 %v339
        %v341 = vperm.slane %v333, %v340
        %v342 = vrot.slane %v325, 4
        %v343 = vsel %vm294, 0.0, %v342
        %v344 = vrot.slane %v329, 4
        %v345 = vsel %vm294, 0.0, %v344
        %v346 = vrot.slane %v337, 4
        %v347 = vsel %vm294, 0.0, %v346
        %v348 = vrot.slane %v341, 4
        %v349 = vsel %vm294, 0.0, %v348
        %v350 = vrot.slane %v246, 4
        %v351 = vsel %vm294, %v350, %v182
        %v352 = vrot.slane %v182, 4
        %v353 = vsel %vm294, %v246, %v352
        %v355 = vunpack.c.l.s4 1983009808
        %v356 = vunpack.c.0.s8 %v355
        %v357 = vperm.slane %v351, %v356
        %v359 = vunpack.c.l.s4 1983009808
        %v360 = vunpack.c.0.s8 %v359
        %v361 = vperm.slane %v353, %v360
        %v362 = vrot.slane %v278, 4
        %v363 = vsel %vm294, %v362, %v214
        %v364 = vrot.slane %v214, 4
        %v365 = vsel %vm294, %v278, %v364
        %v367 = vunpack.c.l.s4 1983009808
        %v368 = vunpack.c.0.s8 %v367
        %v369 = vperm.slane %v363, %v368
        %v371 = vunpack.c.l.s4 1983009808
        %v372 = vunpack.c.0.s8 %v371
        %v373 = vperm.slane %v365, %v372
        %v374 = vrot.slane %v369, 4
        %v375 = vsel %vm294, %v374, %v357
        %v376 = vrot.slane %v357, 4
        %v377 = vsel %vm294, %v369, %v376
        %v379 = vunpack.c.l.s4 1934713408
        %v380 = vunpack.c.0.s8 %v379
        %v381 = vperm.slane %v375, %v380
        %v383 = vunpack.c.l.s4 1934713408
        %v384 = vunpack.c.0.s8 %v383
        %v385 = vperm.slane %v377, %v384
        %v386 = vrot.slane %v373, 4
        %v387 = vsel %vm294, %v386, %v361
        %v388 = vrot.slane %v361, 4
        %v389 = vsel %vm294, %v373, %v388
        %v391 = vunpack.c.l.s4 1934713408
        %v392 = vunpack.c.0.s8 %v391
        %v393 = vperm.slane %v387, %v392
        %v395 = vunpack.c.l.s4 1934713408
        %v396 = vunpack.c.0.s8 %v395
        %v397 = vperm.slane %v389, %v396
        %v398 = vrot.slane %v381, 4
        %v399 = vsel %vm294, 0.0, %v398
        %v400 = vrot.slane %v385, 4
        %v401 = vsel %vm294, 0.0, %v400
        %v402 = vrot.slane %v393, 4
        %v403 = vsel %vm294, 0.0, %v402
        %v404 = vrot.slane %v397, 4
        %v405 = vsel %vm294, 0.0, %v404
        %407 = vrot.lane.b32.xlu0 %v343, 16
        %v408 = vpop.permute.xlu0 %407
        %411 = vrot.lane.b32.xlu0 %v329, 32
        %v412 = vpop.permute.xlu0 %411
        %415 = vrot.lane.b32.xlu0 %v345, 48
        %v416 = vpop.permute.xlu0 %415
        %419 = vrot.lane.b32.xlu0 %v337, 64
        %v420 = vpop.permute.xlu0 %419
        %423 = vrot.lane.b32.xlu0 %v347, 80
        %v424 = vpop.permute.xlu0 %423
        %427 = vrot.lane.b32.xlu0 %v341, 96
        %v428 = vpop.permute.xlu0 %427
        %431 = vrot.lane.b32.xlu0 %v349, 112
        %v432 = vpop.permute.xlu0 %431
        %435 = vrot.lane.b32.xlu0 %v399, 16
        %v436 = vpop.permute.xlu0 %435
        %439 = vrot.lane.b32.xlu0 %v385, 32
        %v440 = vpop.permute.xlu0 %439
        %443 = vrot.lane.b32.xlu0 %v401, 48
        %v444 = vpop.permute.xlu0 %443
        %447 = vrot.lane.b32.xlu0 %v393, 64
        %v448 = vpop.permute.xlu0 %447
        %451 = vrot.lane.b32.xlu0 %v403, 80
        %v452 = vpop.permute.xlu0 %451
        %455 = vrot.lane.b32.xlu0 %v397, 96
        %v456 = vpop.permute.xlu0 %455
        %459 = vrot.lane.b32.xlu0 %v405, 112
        %v460 = vpop.permute.xlu0 %459
        %vm462 = vcmask 130048
        %v463 = vsel %vm462, %v325, %v408
        %vm464 = vcmask 261120
        %v465 = vsel %vm464, %v463, %v412
        %vm466 = vcmask 392192
        %v467 = vsel %vm466, %v465, %v416
        %vm468 = vcmask 523264
        %v469 = vsel %vm468, %v467, %v420
        %vm470 = vcmask 654336
        %v471 = vsel %vm470, %v469, %v424
        %vm472 = vcmask 785408
        %v473 = vsel %vm472, %v471, %v428
        %vm474 = vcmask 916480
        %v475 = vsel %vm474, %v473, %v432
        %v476 = vsel %vm462, %v381, %v436
        %v477 = vsel %vm464, %v476, %v440
        %v478 = vsel %vm466, %v477, %v444
        %v479 = vsel %vm468, %v478, %v448
        %v480 = vsel %vm470, %v479, %v452
        %v481 = vsel %vm472, %v480, %v456
        %v482 = vsel %vm474, %v481, %v460
        %v485 = vrot.slane %v482, 4
        %vm486 = vcmask 1043456
        %v487 = vsel %vm486, %v475, %v485
        %489 = vst [vmem:[%s155] sm:$0xff] %v487
        %s490 = scalar_lea.vmem %s155, 8 [#allocation5]
        %491 = vst [vmem:[%s490] sm:$0xff] %v487
        %s492 = scalar_lea.vmem %s155, 16 [#allocation5]
        %493 = vst [vmem:[%s492] sm:$0xff] %v487
        %s494 = scalar_lea.vmem %s155, 24 [#allocation5]
        %495 = vst [vmem:[%s494] sm:$0xff] %v487
        %s496 = sand.u32 %s68, 1
        %s497 = scalar_lea.sflag [#allocation4], %s496
        %s498 = sand.u32 %s68, 1
        %s499 = smul.addr %s498, 32
        %s500 = scalar_lea.vmem [#allocation5], %s499
        // Predicated region
        $region29: #{tpu_custom_call.1} parent=23 // pred_check
          %p501 = pneg %p78
        $region30: #{tpu_custom_call.1} parent=23 // pred_check_branch
          %503 = sbr.rel (%p501) target = $region32
        $region31: #{tpu_custom_call.1} parent=23 // pred_region
          %505 = vsyncadd %s497, 0
          %s506 = smul.addr %s23, 2
          %s507 = smul.addr %s22, 8
          %s508 = sadd.s32 %s506, %s507
          %s509 = smul.addr %s508, 4
          %s510 = scalar_lea.hbm %s1, %s509
          %s511 = sshll.u32 %s500, 4
          %s512 = int_to_ptr.vmem [resolvable:$true] %s511
          %s513 = sshll.u32 %s510, 4
          %s514 = int_to_ptr.hbm [resolvable:$true] %s513
          %519 = dma.vmem_to_hbm [thread:$0]  %s512, 512, %s514, %s497, 128, 128, 8
        $region32: #{tpu_custom_call.1} parent=23 // pred_fallthru
          _
      $region24: #{tpu_custom_call.1} parent=5 // pred_fallthru
        _
      %p520 = scmp.le.s32.totalorder 2, %s13
      // Predicated region
      $region33: #{tpu_custom_call.1} parent=5 // pred_check
        %p521 = pneg %p520
      $region34: #{tpu_custom_call.1} parent=5 // pred_check_branch
        %523 = sbr.rel (%p521) target = $region36
      $region35: #{tpu_custom_call.1} parent=5 // pred_region
        %s524 = ssub.s32 %s13, 2
        // Predicated region
        $region37: #{tpu_custom_call.1} parent=35 // pred_check
          %p525 = pneg %p84
        $region38: #{tpu_custom_call.1} parent=35 // pred_check_branch
          %527 = sbr.rel (%p525) target = $region40
        $region39: #{tpu_custom_call.1} parent=35 // pred_region
          %s528 = sand.u32 %s69, 1
          %s529 = scalar_lea.sflag [#allocation4], %s528
          %s530 = sand.u32 %s69, 1
          %s531 = smul.addr %s530, 32
          %s532 = scalar_lea.vmem [#allocation5], %s531
          %534 = dma.done %s529, 512
        $region40: #{tpu_custom_call.1} parent=35 // pred_fallthru
          _
      $region36: #{tpu_custom_call.1} parent=5 // pred_fallthru
        _
    $region6: #{tpu_custom_call.1} parent=1 // loop_footer
      %s17 = sadd.s32 1, %s13
    $region7: #{tpu_custom_call.1} parent=1 // loop_footer_branch
      %12 = sbr.rel target = $region3
    $region8: #{tpu_custom_call.1} parent=1 // loop_exit
      _
    %535 = vsyncpa [#allocation3], 1
    %s536 = scalar_lea.sflag [#allocation3], 1
    %537 = vsyncpa %s536, 1
    %538 = vsyncpa [#allocation4], 1
    %s539 = scalar_lea.sflag [#allocation4], 1
    %540 = vsyncpa %s539, 1

// kernel: tpu_custom_call.1
$region0: #{tpu_custom_call.1}
  #allocation0 [shape = 'u32[]', space=smem, size = 0x4, offset = 0x4, fixed_abs, tag = 'smem constant byte address 0x4 - core index']
  #allocation1 [shape = 'u32[72,128]{1,0:T(1,128)}', space=vmem, size = 0x9000, scoped, tag = 'internal scratch']
  %s0 = inlined_call_operand.hbm [shape: f32[2,4,16,16], index: 0, kind: input, shape index: {}]
  %s1 = inlined_call_operand.hbm [shape: f32[2,4,4,16,16], index: 1, kind: output, shape index: {}]
  %s2 = sld [smem:[#allocation0]]
  $region41: #{tpu_custom_call.1} parent=0
    _
  %s4 = ssub.s32 1, %s2
  %s5 = scalar_select 0, %s4, %s2
  $region1: #{tpu_custom_call.1} parent=0
    #allocation2 [shape = 'u8[65536]{0}', space=vmem, size = 0x10000, scoped, tag = 'input window, operand 0']
    #allocation3 [shape = 's32[2]{0}', space=sflag, size = 0x8, scoped, tag = 'scoped memory for tpu_custom_call.1']
    #allocation4 [shape = 's32[2]{0}', space=sflag, size = 0x8, scoped, tag = 'scoped memory for tpu_custom_call.1']
    #allocation5 [shape = 'u8[262144]{0}', space=vmem, size = 0x40000, scoped, tag = 'output window, operand 0']
    %6 = vsyncpa [#allocation3], 0
    %s7 = scalar_lea.sflag [#allocation3], 1
    %8 = vsyncpa %s7, 0
    %9 = vsyncpa [#allocation4], 0
    %s10 = scalar_lea.sflag [#allocation4], 1
    %11 = vsyncpa %s10, 0
    loop: start=0, step=1, limit=4
    $region2: #{tpu_custom_call.1} parent=1 // loop_pre_header
      _
    $region3: #{tpu_custom_call.1} parent=1 // loop_header
      %s13 = sphi 0, %s17
      %p14 = scmp.ge.s32.totalorder %s13, 4
      %s20 = sphi 0, %s32
      %s21 = sphi 0, %s28
      %s22 = sphi 0, %s20
      %s23 = sphi 0, %s21
      %s24 = sphi 0, %s22
      %s25 = sphi 0, %s23
      %s37 = sphi 0, %s39
      %s40 = sphi 0, %s37
      %s41 = sphi 0, %s40
      %s57 = sphi 0, %s41
      %s65 = sphi 0, %s67
      %s68 = sphi 0, %s65
      %s69 = sphi 0, %s68
      %s85 = sphi 0, %s69
    $region4: #{tpu_custom_call.1} parent=1 // loop_header_branch
      %16 = sbr.rel (%p14) target = $region8
    $region5: #{tpu_custom_call.1} parent=1 // loop_body
      %s18 = ssub.s32 %s13, 1
      %s19 = ssub.s32 %s13, 2
      %s26 = sadd.s32 1, %s21
      %p27 = scmp.ge.s32.totalorder %s26, 1
      %s28 = scalar_select %p27, 0, %s26
      %s29 = sadd.s32 1, %s20
      %s30 = scalar_select %p27, %s29, %s20
      %p31 = scmp.ge.s32.totalorder %s30, 2
      %s32 = scalar_select %p31, 0, %s30
      %s33 = ssub.s32 %s20, %s32
      %s34 = ssub.s32 %s21, %s28
      %s35 = sor.u32 %s33, %s34
      %p36 = scmp.eq.s32.totalorder %s35, 0
      %s38 = sadd.s32 %s37, 1
      %s39 = scalar_select %p36, %s37, %s38
      %p42 = pneg %p36
      %p43 = scmp.eq.s32.totalorder %s13, 1
      %p44 = por %p42, %p43
      %p45 = scmp.ne.s32.totalorder %s37, %s40
      %p46 = scmp.eq.s32.totalorder %s13, 0
      %p47 = por %p45, %p46
      %p48 = scmp.ne.s32.totalorder %s37, %s40
      %p49 = scmp.eq.s32.totalorder %s18, 1
      %p50 = por %p48, %p49
      %p51 = scmp.ne.s32.totalorder %s40, %s41
      %p52 = scmp.eq.s32.totalorder %s18, 0
      %p53 = por %p51, %p52
      %p54 = scmp.ne.s32.totalorder %s40, %s41
      %p55 = scmp.eq.s32.totalorder %s19, 1
      %p56 = por %p54, %p55
      %p58 = scmp.ne.s32.totalorder %s41, %s57
      %p59 = scmp.eq.s32.totalorder %s19, 0
      %p60 = por %p58, %p59
      %s61 = ssub.s32 %s20, %s32
      %s62 = ssub.s32 %s21, %s28
      %s63 = sor.u32 %s61, %s62
      %p64 = scmp.eq.s32.totalorder %s63, 0
      %s66 = sadd.s32 %s65, 1
      %s67 = scalar_select %p64, %s65, %s66
      %p70 = pneg %p64
      %p71 = scmp.eq.s32.totalorder %s13, 1
      %p72 = por %p70, %p71
      %p73 = scmp.ne.s32.totalorder %s65, %s68
      %p74 = scmp.eq.s32.totalorder %s13, 0
      %p75 = por %p73, %p74
      %p76 = scmp.ne.s32.totalorder %s65, %s68
      %p77 = scmp.eq.s32.totalorder %s18, 1
      %p78 = por %p76, %p77
      %p79 = scmp.ne.s32.totalorder %s68, %s69
      %p80 = scmp.eq.s32.totalorder %s18, 0
      %p81 = por %p79, %p80
      %p82 = scmp.ne.s32.totalorder %s68, %s69
      %p83 = scmp.eq.s32.totalorder %s19, 1
      %p84 = por %p82, %p83
      %p86 = scmp.ne.s32.totalorder %s69, %s85
      %p87 = scmp.eq.s32.totalorder %s19, 0
      %p88 = por %p86, %p87
      %p89 = scmp.le.s32.totalorder 1, %s13
      %p90 = scmp.lt.s32.totalorder %s13, 3
      %p91 = pnand %p89, %p90
      %p92 = pneg %p91
      // Predicated region
      $region9: #{tpu_custom_call.1} parent=5 // pred_check
        _
      $region10: #{tpu_custom_call.1} parent=5 // pred_check_branch
        %94 = sbr.rel (%p91) target = $region12
      $region11: #{tpu_custom_call.1} parent=5 // pred_region
        %s95 = ssub.s32 %s13, 1
      $region12: #{tpu_custom_call.1} parent=5 // pred_fallthru
        _
      %p96 = scmp.lt.s32.totalorder %s13, 2
      // Predicated region
      $region13: #{tpu_custom_call.1} parent=5 // pred_check
        %p97 = pneg %p96
      $region14: #{tpu_custom_call.1} parent=5 // pred_check_branch
        %99 = sbr.rel (%p97) target = $region16
      $region15: #{tpu_custom_call.1} parent=5 // pred_region
        // Predicated region
        $region17: #{tpu_custom_call.1} parent=15 // pred_check
          %p100 = pneg %p47
        $region18: #{tpu_custom_call.1} parent=15 // pred_check_branch
          %102 = sbr.rel (%p100) target = $region20
        $region19: #{tpu_custom_call.1} parent=15 // pred_region
          %s103 = sand.u32 %s37, 1
          %s104 = scalar_lea.sflag [#allocation3], %s103
          %s105 = sand.u32 %s37, 1
          %s106 = smul.addr %s105, 64
          %s107 = scalar_lea.vmem [#allocation2], %s106
          %s108 = smul.u32 4, %s21
          %110 = vsyncadd %s104, 0
          %s111 = smul.addr %s108, 2
          %s112 = smul.addr %s20, 8
          %s113 = sadd.s32 %s111, %s112
          %s114 = smul.addr %s113, 8
          %s115 = scalar_lea.hbm %s0, %s114
          %s116 = sshll.u32 %s115, 4
          %s117 = int_to_ptr.hbm [resolvable:$true] %s116
          %s118 = sshll.u32 %s107, 4
          %s119 = int_to_ptr.vmem [resolvable:$true] %s118
          %124 = dma.hbm_to_vmem [thread:$0]  %s117, 1024, %s119, %s104, 128, 128, 8
        $region20: #{tpu_custom_call.1} parent=15 // pred_fallthru
          _
      $region16: #{tpu_custom_call.1} parent=5 // pred_fallthru
        _
      %p125 = scmp.le.s32.totalorder 1, %s13
      %p126 = scmp.lt.s32.totalorder %s13, 3
      %p127 = pnand %p125, %p126
      %p128 = pneg %p127
      // Predicated region
      $region21: #{tpu_custom_call.1} parent=5 // pred_check
        _
      $region22: #{tpu_custom_call.1} parent=5 // pred_check_branch
        %130 = sbr.rel (%p127) target = $region24
      $region23: #{tpu_custom_call.1} parent=5 // pred_region
        %s131 = ssub.s32 %s13, 1
        %s132 = sand.u32 %s40, 1
        %s133 = scalar_lea.sflag [#allocation3], %s132
        %s134 = sand.u32 %s40, 1
        %s135 = smul.addr %s134, 64
        %s136 = scalar_lea.vmem [#allocation2], %s135
        // Predicated region
        $region25: #{tpu_custom_call.1} parent=23 // pred_check
          %p137 = pneg %p53
        $region26: #{tpu_custom_call.1} parent=23 // pred_check_branch
          %139 = sbr.rel (%p137) target = $region28
        $region27: #{tpu_custom_call.1} parent=23 // pred_region
          %141 = dma.done %s133, 1024
        $region28: #{tpu_custom_call.1} parent=23 // pred_fallthru
          _
        %s142 = sand.u32 %s40, 1
        %s143 = scalar_lea.sflag [#allocation3], %s142
        %s144 = sand.u32 %s40, 1
        %s145 = smul.addr %s144, 64
        %s146 = scalar_lea.vmem [#allocation2], %s145
        %p147 = pneg %p53
        %p148 = pneg %p50
        %p149 = pneg %p81
        %p150 = pneg %p78
        %s151 = sand.u32 %s68, 1
        %s152 = scalar_lea.sflag [#allocation4], %s151
        %s153 = sand.u32 %s68, 1
        %s154 = smul.addr %s153, 256
        %s155 = scalar_lea.vmem [#allocation5], %s154
        %s156 = smul.u32 4, %s23
        %s157 = smul.u32 4, %s23
        %v158 = vld [vmem:[%s136] sm:$0xff]
        %v159 = vld [vmem:[%s136 + $0x8] sm:$0xff]
        %v160 = vld [vmem:[%s136 + $0x10] sm:$0xff]
        %v161 = vld [vmem:[%s136 + $0x18] sm:$0xff]
        %v162 = vld [vmem:[%s136 + $0x20] sm:$0xff]
        %v163 = vld [vmem:[%s136 + $0x28] sm:$0xff]
        %v164 = vld [vmem:[%s136 + $0x30] sm:$0xff]
        %v165 = vld [vmem:[%s136 + $0x38] sm:$0xff]
        %166 = vxpose.xlu0.b32.start [1/16] %v158, 128
        %167 = vxpose.xlu0.b32.cont [2/16] %v159, 128
        %168 = vxpose.xlu0.b32.cont [3/16] 0.0, 128
        %169 = vxpose.xlu0.b32.cont [4/16] 0.0, 128
        %170 = vxpose.xlu0.b32.cont [5/16] 0.0, 128
        %171 = vxpose.xlu0.b32.cont [6/16] 0.0, 128
        %172 = vxpose.xlu0.b32.cont [7/16] 0.0, 128
        %173 = vxpose.xlu0.b32.cont [8/16] 0.0, 128
        %174 = vxpose.xlu0.b32.cont [9/16] 0.0, 128
        %175 = vxpose.xlu0.b32.cont [10/16] 0.0, 128
        %176 = vxpose.xlu0.b32.cont [11/16] 0.0, 128
        %177 = vxpose.xlu0.b32.cont [12/16] 0.0, 128
        %178 = vxpose.xlu0.b32.cont [13/16] 0.0, 128
        %179 = vxpose.xlu0.b32.cont [14/16] 0.0, 128
        %180 = vxpose.xlu0.b32.cont [15/16] 0.0, 128
        %181 = vxpose.xlu0.b32.end [16/16] 0.0, 128
        %v182 = vpop.trf.xlu0
        %v183 = vpop.trf.xlu0
        %v184 = vpop.trf.xlu0
        %v185 = vpop.trf.xlu0
        %v186 = vpop.trf.xlu0
        %v187 = vpop.trf.xlu0
        %v188 = vpop.trf.xlu0
        %v189 = vpop.trf.xlu0
        %v190 = vpop.trf.xlu0
        %v191 = vpop.trf.xlu0
        %v192 = vpop.trf.xlu0
        %v193 = vpop.trf.xlu0
        %v194 = vpop.trf.xlu0
        %v195 = vpop.trf.xlu0
        %v196 = vpop.trf.xlu0
        %v197 = vpop.trf.xlu0
        %198 = vxpose.xlu0.b32.start [1/16] %v160, 128
        %199 = vxpose.xlu0.b32.cont [2/16] %v161, 128
        %200 = vxpose.xlu0.b32.cont [3/16] 0.0, 128
        %201 = vxpose.xlu0.b32.cont [4/16] 0.0, 128
        %202 = vxpose.xlu0.b32.cont [5/16] 0.0, 128
        %203 = vxpose.xlu0.b32.cont [6/16] 0.0, 128
        %204 = vxpose.xlu0.b32.cont [7/16] 0.0, 128
        %205 = vxpose.xlu0.b32.cont [8/16] 0.0, 128
        %206 = vxpose.xlu0.b32.cont [9/16] 0.0, 128
        %207 = vxpose.xlu0.b32.cont [10/16] 0.0, 128
        %208 = vxpose.xlu0.b32.cont [11/16] 0.0, 128
        %209 = vxpose.xlu0.b32.cont [12/16] 0.0, 128
        %210 = vxpose.xlu0.b32.cont [13/16] 0.0, 128
        %211 = vxpose.xlu0.b32.cont [14/16] 0.0, 128
        %212 = vxpose.xlu0.b32.cont [15/16] 0.0, 128
        %213 = vxpose.xlu0.b32.end [16/16] 0.0, 128
        %v214 = vpop.trf.xlu0
        %v215 = vpop.trf.xlu0
        %v216 = vpop.trf.xlu0
        %v217 = vpop.trf.xlu0
        %v218 = vpop.trf.xlu0
        %v219 = vpop.trf.xlu0
        %v220 = vpop.trf.xlu0
        %v221 = vpop.trf.xlu0
        %v222 = vpop.trf.xlu0
        %v223 = vpop.trf.xlu0
        %v224 = vpop.trf.xlu0
        %v225 = vpop.trf.xlu0
        %v226 = vpop.trf.xlu0
        %v227 = vpop.trf.xlu0
        %v228 = vpop.trf.xlu0
        %v229 = vpop.trf.xlu0
        %230 = vxpose.xlu0.b32.start [1/16] %v162, 128
        %231 = vxpose.xlu0.b32.cont [2/16] %v163, 128
        %232 = vxpose.xlu0.b32.cont [3/16] 0.0, 128
        %233 = vxpose.xlu0.b32.cont [4/16] 0.0, 128
        %234 = vxpose.xlu0.b32.cont [5/16] 0.0, 128
        %235 = vxpose.xlu0.b32.cont [6/16] 0.0, 128
        %236 = vxpose.xlu0.b32.cont [7/16] 0.0, 128
        %237 = vxpose.xlu0.b32.cont [8/16] 0.0, 128
        %238 = vxpose.xlu0.b32.cont [9/16] 0.0, 128
        %239 = vxpose.xlu0.b32.cont [10/16] 0.0, 128
        %240 = vxpose.xlu0.b32.cont [11/16] 0.0, 128
        %241 = vxpose.xlu0.b32.cont [12/16] 0.0, 128
        %242 = vxpose.xlu0.b32.cont [13/16] 0.0, 128
        %243 = vxpose.xlu0.b32.cont [14/16] 0.0, 128
        %244 = vxpose.xlu0.b32.cont [15/16] 0.0, 128
        %245 = vxpose.xlu0.b32.end [16/16] 0.0, 128
        %v246 = vpop.trf.xlu0
        %v247 = vpop.trf.xlu0
        %v248 = vpop.trf.xlu0
        %v249 = vpop.trf.xlu0
        %v250 = vpop.trf.xlu0
        %v251 = vpop.trf.xlu0
        %v252 = vpop.trf.xlu0
        %v253 = vpop.trf.xlu0
        %v254 = vpop.trf.xlu0
        %v255 = vpop.trf.xlu0
        %v256 = vpop.trf.xlu0
        %v257 = vpop.trf.xlu0
        %v258 = vpop.trf.xlu0
        %v259 = vpop.trf.xlu0
        %v260 = vpop.trf.xlu0
        %v261 = vpop.trf.xlu0
        %262 = vxpose.xlu0.b32.start [1/16] %v164, 128
        %263 = vxpose.xlu0.b32.cont [2/16] %v165, 128
        %264 = vxpose.xlu0.b32.cont [3/16] 0.0, 128
        %265 = vxpose.xlu0.b32.cont [4/16] 0.0, 128
        %266 = vxpose.xlu0.b32.cont [5/16] 0.0, 128
        %267 = vxpose.xlu0.b32.cont [6/16] 0.0, 128
        %268 = vxpose.xlu0.b32.cont [7/16] 0.0, 128
        %269 = vxpose.xlu0.b32.cont [8/16] 0.0, 128
        %270 = vxpose.xlu0.b32.cont [9/16] 0.0, 128
        %271 = vxpose.xlu0.b32.cont [10/16] 0.0, 128
        %272 = vxpose.xlu0.b32.cont [11/16] 0.0, 128
        %273 = vxpose.xlu0.b32.cont [12/16] 0.0, 128
        %274 = vxpose.xlu0.b32.cont [13/16] 0.0, 128
        %275 = vxpose.xlu0.b32.cont [14/16] 0.0, 128
        %276 = vxpose.xlu0.b32.cont [15/16] 0.0, 128
        %277 = vxpose.xlu0.b32.end [16/16] 0.0, 128
        %v278 = vpop.trf.xlu0
        %v279 = vpop.trf.xlu0
        %v280 = vpop.trf.xlu0
        %v281 = vpop.trf.xlu0
        %v282 = vpop.trf.xlu0
        %v283 = vpop.trf.xlu0
        %v284 = vpop.trf.xlu0
        %v285 = vpop.trf.xlu0
        %v286 = vpop.trf.xlu0
        %v287 = vpop.trf.xlu0
        %v288 = vpop.trf.xlu0
        %v289 = vpop.trf.xlu0
        %v290 = vpop.trf.xlu0
        %v291 = vpop.trf.xlu0
        %v292 = vpop.trf.xlu0
        %v293 = vpop.trf.xlu0
        %vm294 = vcmask 130048
        %295 = vst.msk [vmem:[%s155] sm:$0xff] %vm294, %v182
        %296 = vst.msk [vmem:[%s155 + $0x8] sm:$0xff] %vm294, %v183
        %297 = vst.msk [vmem:[%s155 + $0x10] sm:$0xff] %vm294, %v214
        %298 = vst.msk [vmem:[%s155 + $0x18] sm:$0xff] %vm294, %v215
        %299 = vst.msk [vmem:[%s155 + $0x20] sm:$0xff] %vm294, %v246
        %300 = vst.msk [vmem:[%s155 + $0x28] sm:$0xff] %vm294, %v247
        %301 = vst.msk [vmem:[%s155 + $0x30] sm:$0xff] %vm294, %v278
        %302 = vst.msk [vmem:[%s155 + $0x38] sm:$0xff] %vm294, %v279
        %s303 = scalar_lea.vmem %s155, 64 [#allocation5]
        %304 = vst.msk [vmem:[%s303] sm:$0xff] %vm294, %v182
        %305 = vst.msk [vmem:[%s303 + $0x8] sm:$0xff] %vm294, %v183
        %306 = vst.msk [vmem:[%s303 + $0x10] sm:$0xff] %vm294, %v214
        %307 = vst.msk [vmem:[%s303 + $0x18] sm:$0xff] %vm294, %v215
        %308 = vst.msk [vmem:[%s303 + $0x20] sm:$0xff] %vm294, %v246
        %309 = vst.msk [vmem:[%s303 + $0x28] sm:$0xff] %vm294, %v247
        %310 = vst.msk [vmem:[%s303 + $0x30] sm:$0xff] %vm294, %v278
        %311 = vst.msk [vmem:[%s303 + $0x38] sm:$0xff] %vm294, %v279
        %s312 = scalar_lea.vmem %s155, 128 [#allocation5]
        %313 = vst.msk [vmem:[%s312] sm:$0xff] %vm294, %v182
        %314 = vst.msk [vmem:[%s312 + $0x8] sm:$0xff] %vm294, %v183
        %315 = vst.msk [vmem:[%s312 + $0x10] sm:$0xff] %vm294, %v214
        %316 = vst.msk [vmem:[%s312 + $0x18] sm:$0xff] %vm294, %v215
        %317 = vst.msk [vmem:[%s312 + $0x20] sm:$0xff] %vm294, %v246
        %318 = vst.msk [vmem:[%s312 + $0x28] sm:$0xff] %vm294, %v247
        %319 = vst.msk [vmem:[%s312 + $0x30] sm:$0xff] %vm294, %v278
        %320 = vst.msk [vmem:[%s312 + $0x38] sm:$0xff] %vm294, %v279
        %s321 = scalar_lea.vmem %s155, 192 [#allocation5]
        %322 = vst.msk [vmem:[%s321] sm:$0xff] %vm294, %v182
        %323 = vst.msk [vmem:[%s321 + $0x8] sm:$0xff] %vm294, %v183
        %324 = vst.msk [vmem:[%s321 + $0x10] sm:$0xff] %vm294, %v214
        %325 = vst.msk [vmem:[%s321 + $0x18] sm:$0xff] %vm294, %v215
        %326 = vst.msk [vmem:[%s321 + $0x20] sm:$0xff] %vm294, %v246
        %327 = vst.msk [vmem:[%s321 + $0x28] sm:$0xff] %vm294, %v247
        %328 = vst.msk [vmem:[%s321 + $0x30] sm:$0xff] %vm294, %v278
        %329 = vst.msk [vmem:[%s321 + $0x38] sm:$0xff] %vm294, %v279
        %s330 = sand.u32 %s68, 1
        %s331 = scalar_lea.sflag [#allocation4], %s330
        %s332 = sand.u32 %s68, 1
        %s333 = smul.addr %s332, 256
        %s334 = scalar_lea.vmem [#allocation5], %s333
        // Predicated region
        $region29: #{tpu_custom_call.1} parent=23 // pred_check
          %p335 = pneg %p78
        $region30: #{tpu_custom_call.1} parent=23 // pred_check_branch
          %337 = sbr.rel (%p335) target = $region32
        $region31: #{tpu_custom_call.1} parent=23 // pred_region
          %s338 = smul.u32 4, %s23
          %340 = vsyncadd %s331, 0
          %s341 = smul.addr %s338, 2
          %s342 = smul.addr %s22, 32
          %s343 = sadd.s32 %s341, %s342
          %s344 = smul.addr %s343, 8
          %s345 = scalar_lea.hbm %s1, %s344
          %s346 = sshll.u32 %s334, 4
          %s347 = int_to_ptr.vmem [resolvable:$true] %s346
          %s348 = sshll.u32 %s345, 4
          %s349 = int_to_ptr.hbm [resolvable:$true] %s348
          %354 = dma.vmem_to_hbm [thread:$0]  %s347, 4096, %s349, %s331, 128, 128, 8
        $region32: #{tpu_custom_call.1} parent=23 // pred_fallthru
          _
      $region24: #{tpu_custom_call.1} parent=5 // pred_fallthru
        _
      %p355 = scmp.le.s32.totalorder 2, %s13
      // Predicated region
      $region33: #{tpu_custom_call.1} parent=5 // pred_check
        %p356 = pneg %p355
      $region34: #{tpu_custom_call.1} parent=5 // pred_check_branch
        %358 = sbr.rel (%p356) target = $region36
      $region35: #{tpu_custom_call.1} parent=5 // pred_region
        %s359 = ssub.s32 %s13, 2
        // Predicated region
        $region37: #{tpu_custom_call.1} parent=35 // pred_check
          %p360 = pneg %p84
        $region38: #{tpu_custom_call.1} parent=35 // pred_check_branch
          %362 = sbr.rel (%p360) target = $region40
        $region39: #{tpu_custom_call.1} parent=35 // pred_region
          %s363 = sand.u32 %s69, 1
          %s364 = scalar_lea.sflag [#allocation4], %s363
          %s365 = sand.u32 %s69, 1
          %s366 = smul.addr %s365, 256
          %s367 = scalar_lea.vmem [#allocation5], %s366
          %369 = dma.done %s364, 4096
        $region40: #{tpu_custom_call.1} parent=35 // pred_fallthru
          _
      $region36: #{tpu_custom_call.1} parent=5 // pred_fallthru
        _
    $region6: #{tpu_custom_call.1} parent=1 // loop_footer
      %s17 = sadd.s32 1, %s13
    $region7: #{tpu_custom_call.1} parent=1 // loop_footer_branch
      %12 = sbr.rel target = $region3
    $region8: #{tpu_custom_call.1} parent=1 // loop_exit
      _
    %370 = vsyncpa [#allocation3], 1
    %s371 = scalar_lea.sflag [#allocation3], 1
    %372 = vsyncpa %s371, 1
    %373 = vsyncpa [#allocation4], 1
    %s374 = scalar_lea.sflag [#allocation4], 1
    %375 = vsyncpa %s374, 1

</llo_original>
